<compile_context>
chip_gen: v6e
topology: v6e:2x2x1
jax: 0.10.0
libtpu: 0.0.40
codegen_flags: <defaults>
</compile_context>

<pallas_src>
import functools
import math

import jax
import jax.numpy as jnp
from jax.experimental import pallas as pl
from jax.experimental.pallas import tpu as pltpu


# ----------------------------------------------------------------------------
# small helpers
# ----------------------------------------------------------------------------
def _round_up(x, m):
    return ((x + m - 1) // m) * m


def _pad_to(a, shape):
    pads = [(0, s - d) for d, s in zip(a.shape, shape)]
    if all(p == (0, 0) for p in pads):
        return a
    return jnp.pad(a, pads)


def _pad_gate_blocks(w, nhid, nhid_p):
    """Last axis is 4*nhid in PyTorch gate order (i,f,g,o); pad each gate block
    to nhid_p so gate slices land on 128-lane boundaries."""
    if nhid_p == nhid:
        return w
    parts = jnp.split(w, 4, axis=-1)
    pad_width = [(0, 0)] * (w.ndim - 1) + [(0, nhid_p - nhid)]
    return jnp.concatenate([jnp.pad(p, pad_width) for p in parts], axis=-1)


def _choose_tile(dim, unit, max_tile):
    """Largest multiple of `unit` that is <= max_tile and divides `dim` (so no
    padded-M/N/K copies).  Falls back to round-up if `dim` is not unit-aligned."""
    if dim % unit != 0:
        return min(max(max_tile, unit), _round_up(dim, unit))
    t = min(max_tile, dim)
    t -= t % unit
    while dim % t != 0:
        t -= unit
    return t


# ----------------------------------------------------------------------------
# Tiled linear kernel:  y = x @ w_T + b   (bf16 MXU operands, f32 accumulate)
# Used for (a) the hoisted per-sequence input projection of the LSTM gates and
# (b) the final output projection.
# ----------------------------------------------------------------------------
def _linear_kernel(x_ref, w_ref, b_ref, o_ref, acc_ref):
    @pl.when(pl.program_id(2) == 0)
    def _():
        acc_ref[...] = jnp.zeros_like(acc_ref)

    acc_ref[...] += jnp.dot(x_ref[...], w_ref[...],
                            preferred_element_type=jnp.float32)

    @pl.when(pl.program_id(2) == pl.num_programs(2) - 1)
    def _():
        o_ref[...] = (acc_ref[...] + b_ref[...]).astype(o_ref.dtype)


def tiled_linear(x, w_T, b, out_dtype=jnp.float32):
    """x: (M, K), w_T: (K, N), b: (N,)/(1, N).  Returns (M, N) in out_dtype."""
    M, K = x.shape
    K2, N = w_T.shape
    assert K == K2
    # Tiles chosen as divisors of the (lane-padded) dims -> Mp == M, Np == N,
    # Kp == K for the hot paths, so no padded-intermediate copies.
    tm = _choose_tile(M, 8, 256)
    tn = _choose_tile(N, 128, 512)
    tk = _choose_tile(K, 128, 1024)
    Mp, Np, Kp = _round_up(M, tm), _round_up(N, tn), _round_up(K, tk)

    if x.dtype != jnp.bfloat16:
        x = x.astype(jnp.bfloat16)
    if w_T.dtype != jnp.bfloat16:
        w_T = w_T.astype(jnp.bfloat16)
    xp = _pad_to(x, (Mp, Kp))
    wp = _pad_to(w_T, (Kp, Np))
    bp = _pad_to(b.reshape(1, -1).astype(jnp.float32), (1, Np))

    out = pl.pallas_call(
        _linear_kernel,
        out_shape=jax.ShapeDtypeStruct((Mp, Np), out_dtype),
        grid_spec=pltpu.PrefetchScalarGridSpec(
            num_scalar_prefetch=0,
            grid=(Mp // tm, Np // tn, Kp // tk),
            in_specs=[
                pl.BlockSpec((tm, tk), lambda i, j, k: (i, k)),
                pl.BlockSpec((tk, tn), lambda i, j, k: (k, j)),
                pl.BlockSpec((1, tn), lambda i, j, k: (0, j)),
            ],
            out_specs=pl.BlockSpec((tm, tn), lambda i, j, k: (i, j)),
            scratch_shapes=[pltpu.VMEM((tm, tn), jnp.float32)]),
        compiler_params=pltpu.CompilerParams(
            dimension_semantics=("parallel", "parallel", "arbitrary")),
    )(xp, wp, bp)
    if (Mp, Np) != (M, N):
        out = out[:M, :N]
    return out


# ----------------------------------------------------------------------------
# LSTM recurrence kernel (sequence-chunked).  gates_x (= x @ W_ih^T + b for
# every timestep) is precomputed in bf16; the kernel only does the sequential
# h @ W_hh^T + gate math.  Grid = (batch_blocks, seq_chunks); (h, c) carried in
# VMEM scratch across the "arbitrary" seq axis.
# ----------------------------------------------------------------------------
def _lstm_recurrence_kernel(gx_ref, h0_ref, c0_ref, whh_ref,
                            y_ref, hT_ref, cT_ref,
                            h_scr, c_scr, *, unroll):
    ts = gx_ref.shape[0]            # timesteps in this chunk
    nhid = h0_ref.shape[-1]         # lane-padded hidden size (multiple of 128)

    @pl.when(pl.program_id(1) == 0)
    def _():
        h_scr[...] = h0_ref[...]
        c_scr[...] = c0_ref[...]

    def step(t, carry):
        h, c = carry                # f32 carries (VPU/EUP math stays f32)
        gates = gx_ref[t].astype(jnp.float32) + jnp.dot(
            h.astype(whh_ref.dtype), whh_ref[...],
            preferred_element_type=jnp.float32)
        # PyTorch gate order: input, forget, cell(g), output — 128-aligned slices
        # sigmoid(x) == 0.5*tanh(0.5*x)+0.5 : one EUP op per gate, no divide.
        i_g = 0.5 * jnp.tanh(0.5 * gates[:, 0 * nhid:1 * nhid]) + 0.5
        f_g = 0.5 * jnp.tanh(0.5 * gates[:, 1 * nhid:2 * nhid]) + 0.5
        g_g = jnp.tanh(gates[:, 2 * nhid:3 * nhid])
        o_g = 0.5 * jnp.tanh(0.5 * gates[:, 3 * nhid:4 * nhid]) + 0.5
        c_new = f_g * c + i_g * g_g
        h_new = o_g * jnp.tanh(c_new)
        y_ref[t] = h_new.astype(y_ref.dtype)    # bf16 inter-layer activation
        return h_new, c_new

    h_fin, c_fin = jax.lax.fori_loop(0, ts, step, (h_scr[...], c_scr[...]),
                                     unroll=unroll)
    h_scr[...] = h_fin
    c_scr[...] = c_fin

    @pl.when(pl.program_id(1) == pl.num_programs(1) - 1)
    def _():
        hT_ref[...] = h_fin
        cT_ref[...] = c_fin


def _choose_seq_chunk(seq, bb, nhid_p, budget=44 << 20):
    """Largest chunk (dividing seq) whose double-buffered bf16 gx/y blocks plus
    W_hh + carries fit the VMEM budget (sized for v7x's 64 MiB/TC with headroom)."""
    per_t = 2 * bb * 4 * nhid_p * 2 + 2 * bb * nhid_p * 2   # 2x-buffered gx + y
    fixed = 2 * nhid_p * 4 * nhid_p * 2 + 10 * bb * nhid_p * 4
    avail = max(budget - fixed, per_t)
    ts = int(max(1, min(seq, avail // per_t)))
    while seq % ts:
        ts -= 1
    return ts


def _choose_unroll(ts, bb, nhid_p):
    """Full unroll only if the chunk's live state fits the 64-vreg file;
    otherwise partial unroll to keep LLO scheduling visibility w/o spills."""
    vregs_per_arr = max(1, (bb * nhid_p) // 1024)           # f32 vreg = 1024 elems
    if ts <= 8 and ts * vregs_per_arr * 10 <= 48:
        return True
    return max(1, min(4, ts))


def lstm_recurrence(gates_x, h0, c0, whh_T):
    """gates_x: (seq, batch_p, 4*nhid_p) bf16; h0/c0: (batch_p, nhid_p) f32;
    whh_T: (nhid_p, 4*nhid_p) bf16.  Returns (y bf16, hT f32, cT f32)."""
    seq, batch_p, g4 = gates_x.shape
    nhid_p = h0.shape[-1]

    # v7x megacore: split batch across the 2 TensorCores if each half keeps
    # (16, 128) bf16 tiling; harmless (single block) on v5e/v6e.
    nbb = 2 if (batch_p % 32 == 0) else 1
    bb = batch_p // nbb

    ts = _choose_seq_chunk(seq, bb, nhid_p)
    nchunks = seq // ts
    unroll = _choose_unroll(ts, bb, nhid_p)

    # Chunked working set (double-buffered pipeline blocks) + headroom; keep
    # below v7x's 64 MiB physical per-TC VMEM.
    working = (2 * nhid_p * g4 * 2            # W_hh bf16
               + 2 * ts * bb * g4 * 2         # gx chunk bf16, 2 bufs
               + 2 * ts * bb * nhid_p * 2     # y chunk bf16, 2 bufs
               + 10 * bb * nhid_p * 4)        # h0,c0,hT,cT + h/c scratch f32
    vmem_limit = int(min(56 << 20, max(32 << 20, working + (8 << 20))))

    kernel = functools.partial(_lstm_recurrence_kernel, unroll=unroll)
    return pl.pallas_call(
        kernel,
        out_shape=(jax.ShapeDtypeStruct((seq, batch_p, nhid_p), jnp.bfloat16),
                   jax.ShapeDtypeStruct((batch_p, nhid_p), jnp.float32),
                   jax.ShapeDtypeStruct((batch_p, nhid_p), jnp.float32)),
        grid_spec=pltpu.PrefetchScalarGridSpec(
            num_scalar_prefetch=0,
            grid=(nbb, nchunks),
            in_specs=[
                pl.BlockSpec((ts, bb, g4), lambda b, t: (t, b, 0)),
                pl.BlockSpec((bb, nhid_p), lambda b, t: (b, 0)),
                pl.BlockSpec((bb, nhid_p), lambda b, t: (b, 0)),
                pl.BlockSpec((nhid_p, g4), lambda b, t: (0, 0)),
            ],
            out_specs=(
                pl.BlockSpec((ts, bb, nhid_p), lambda b, t: (t, b, 0)),
                pl.BlockSpec((bb, nhid_p), lambda b, t: (b, 0)),
                pl.BlockSpec((bb, nhid_p), lambda b, t: (b, 0)),
            ),
            scratch_shapes=[pltpu.VMEM((bb, nhid_p), jnp.float32),
                            pltpu.VMEM((bb, nhid_p), jnp.float32)]),
        compiler_params=pltpu.CompilerParams(
            dimension_semantics=("parallel", "arbitrary"),
            vmem_limit_bytes=vmem_limit),
    )(gates_x, h0, c0, whh_T)


# ----------------------------------------------------------------------------
# Parameter init (raw PyTorch layout) and packing into kernel layout
# ----------------------------------------------------------------------------
def init_params(key, ninp, nhid, nout, nlayers, proj=True):
    """Raw PyTorch-style params: per-layer (w_ih, w_hh, b_ih, b_hh)."""
    k = 1.0 / math.sqrt(nhid)
    lstm = []
    for l in range(nlayers):
        in_dim = ninp if l == 0 else nhid
        key, k1, k2, k3, k4 = jax.random.split(key, 5)
        w_ih = jax.random.uniform(k1, (4 * nhid, in_dim), jnp.float32, -k, k)
        w_hh = jax.random.uniform(k2, (4 * nhid, nhid), jnp.float32, -k, k)
        b_ih = jax.random.uniform(k3, (4 * nhid,), jnp.float32, -k, k)
        b_hh = jax.random.uniform(k4, (4 * nhid,), jnp.float32, -k, k)
        lstm.append((w_ih, w_hh, b_ih, b_hh))
    proj_p = None
    if proj:
        key, k1, k2 = jax.random.split(key, 3)
        w = jax.random.normal(k1, (nout, nhid), jnp.float32) * 0.02
        b = jax.random.uniform(k2, (nout,), jnp.float32, -k, k)
        proj_p = (w, b)
    return {"lstm": lstm, "proj": proj_p}


def pack_params(raw, ninp, nhid, nout):
    """Transpose, lane-pad (per gate block) and cast weights to bf16."""
    nhid_p = _round_up(nhid, 128)
    ninp_p = _round_up(ninp, 128)
    lstm = []
    for l, (w_ih, w_hh, b_ih, b_hh) in enumerate(raw["lstm"]):
        in_p = ninp_p if l == 0 else nhid_p
        wih_T = _pad_gate_blocks(w_ih.T, nhid, nhid_p)     # (in, 4*nhid_p)
        wih_T = _pad_to(wih_T, (in_p, 4 * nhid_p))
        whh_T = _pad_gate_blocks(w_hh.T, nhid, nhid_p)     # (nhid, 4*nhid_p)
        whh_T = _pad_to(whh_T, (nhid_p, 4 * nhid_p))
        bias = _pad_gate_blocks((b_ih + b_hh)[None, :], nhid, nhid_p)
        lstm.append((wih_T.astype(jnp.bfloat16),
                     whh_T.astype(jnp.bfloat16),
                     bias.astype(jnp.float32)))
    proj = None
    nout_p = _round_up(nout, 128)
    if raw["proj"] is not None:
        w, b = raw["proj"]                                  # w: (nout, nhid)
        w_T = _pad_to(w.T, (nhid_p, nout_p))
        b_p = _pad_to(b[None, :], (1, nout_p))
        proj = (w_T.astype(jnp.bfloat16), b_p.astype(jnp.float32))
    return {"lstm": lstm, "proj": proj,
            "dims": dict(ninp=ninp, nhid=nhid, nout=nout,
                         ninp_p=ninp_p, nhid_p=nhid_p, nout_p=nout_p)}


# ----------------------------------------------------------------------------
# Full RNNModel.forward
# ----------------------------------------------------------------------------
def rnn_model_forward(inputs, hidden, packed):
    """inputs: (seq, batch, ninp); hidden: (h0, c0) each (nlayers, batch, nhid)."""
    dims = packed["dims"]
    nhid, nout = dims["nhid"], dims["nout"]
    nhid_p, ninp_p = dims["nhid_p"], dims["ninp_p"]
    seq, batch, _ = inputs.shape
    batch_p = _round_up(batch, 16)       # 16: bf16 packs two rows per sublane
    h0_all, c0_all = hidden
    nlayers = h0_all.shape[0]

    # dropout(eval) = identity.  TODO(synk): training-mode dropout.
    x = _pad_to(inputs, (seq, batch_p, ninp_p)).astype(jnp.bfloat16)

    h_fin, c_fin = [], []
    for l in range(nlayers):
        wih_T, whh_T, bias = packed["lstm"][l]
        h0 = _pad_to(h0_all[l].astype(jnp.float32), (batch_p, nhid_p))
        c0 = _pad_to(c0_all[l].astype(jnp.float32), (batch_p, nhid_p))

        # Hoisted input projection: one MXU-efficient matmul over all timesteps.
        # bf16 output halves the dominant HBM stream (written here, read by the
        # recurrence); M = seq*batch_p is tile-exact so no padded-M copy.
        gx = tiled_linear(x.reshape(seq * batch_p, x.shape[-1]), wih_T, bias,
                          out_dtype=jnp.bfloat16)
        gx = gx.reshape(seq, batch_p, 4 * nhid_p)

        # Sequential part: only h @ W_hh per timestep, chunked over seq.
        y, hT, cT = lstm_recurrence(gx, h0, c0, whh_T)
        h_fin.append(hT[:batch, :nhid])
        c_fin.append(cT[:batch, :nhid])
        x = y                  # stays lane/sublane padded + bf16 between layers

    if packed["proj"] is not None:
        w_T, b = packed["proj"]
        out = tiled_linear(x.reshape(seq * batch_p, nhid_p), w_T, b,
                           out_dtype=jnp.float32)
        out = out.reshape(seq, batch_p, -1)[:, :batch, :nout]
        out2d = out.reshape(seq * batch, nout)
    else:
        out2d = x[:, :batch, :nhid].astype(jnp.float32).reshape(seq * batch, nhid)

    # dropout(eval) = identity
    return out2d, (jnp.stack(h_fin, axis=0), jnp.stack(c_fin, axis=0))


# ----------------------------------------------------------------------------
# Pure-JAX f32 reference (PyTorch semantics) for correctness checking
# ----------------------------------------------------------------------------
def rnn_model_reference(inputs, hidden, raw):
    h0_all, c0_all = hidden
    x = inputs
    hs, cs = [], []
    for l, (w_ih, w_hh, b_ih, b_hh) in enumerate(raw["lstm"]):
        def step(carry, x_t, w_ih=w_ih, w_hh=w_hh, b_ih=b_ih, b_hh=b_hh):
            h, c = carry
            gates = x_t @ w_ih.T + h @ w_hh.T + b_ih + b_hh
            i, f, g, o = jnp.split(gates, 4, axis=-1)
            i = jax.nn.sigmoid(i); f = jax.nn.sigmoid(f)
            g = jnp.tanh(g); o = jax.nn.sigmoid(o)
            c = f * c + i * g
            h = o * jnp.tanh(c)
            return (h, c), h
        (hT, cT), ys = jax.lax.scan(step, (h0_all[l], c0_all[l]), x)
        hs.append(hT); cs.append(cT)
        x = ys
    seq, batch, nhid = x.shape
    out = x.reshape(seq * batch, nhid)
    if raw["proj"] is not None:
        w, b = raw["proj"]
        out = out @ w.T + b
    return out, (jnp.stack(hs), jnp.stack(cs))


if __name__ == "__main__":
    # small shapes consistent with the module
    seq_len, batch = 8, 4
    ntokens, ninp, nhid, nout, nlayers = 100, 16, 32, 16, 2

    key = jax.random.PRNGKey(0)
    key, kx = jax.random.split(key)
    inputs = jax.random.normal(kx, (seq_len, batch, ninp), jnp.float32)

    # init_hidden(bsz): zeros (nlayers, batch, nhid)
    h0 = jnp.zeros((nlayers, batch, nhid), jnp.float32)
    c0 = jnp.zeros((nlayers, batch, nhid), jnp.float32)

    raw = init_params(key, ninp, nhid, nout, nlayers, proj=True)
    packed = pack_params(raw, ninp, nhid, nout)

    out, (h_n, c_n) = rnn_model_forward(inputs, (h0, c0), packed)
    jax.block_until_ready((out, h_n, c_n))

    assert out.shape == (seq_len * batch, nout)
    assert h_n.shape == (nlayers, batch, nhid)
    assert c_n.shape == (nlayers, batch, nhid)

    # numerical check vs pure-JAX f32 reference (loose tol: bf16 MXU operands,
    # bf16 gx / inter-layer activations)
    out_ref, (h_ref, c_ref) = rnn_model_reference(inputs, (h0, c0), raw)
    assert jnp.allclose(out, out_ref, atol=5e-2, rtol=5e-2)
    assert jnp.allclose(h_n, h_ref, atol=5e-2, rtol=5e-2)
    assert jnp.allclose(c_n, c_ref, atol=5e-2, rtol=5e-2)

    print("KERNEL_OK")
</pallas_src>

<mosaic_0001>
module attributes {stable_mosaic.version = 11 : i64} {
  func.func @_linear_kernel(%arg0: i32, %arg1: i32, %arg2: i32, %arg3: memref<128x128xbf16, #tpu.memory_space<vmem>>, %arg4: memref<128x512xbf16, #tpu.memory_space<vmem>>, %arg5: memref<1x512xf32, #tpu.memory_space<vmem>>, %arg6: memref<128x512xbf16, #tpu.memory_space<vmem>>, %arg7: memref<128x512xf32, #tpu.memory_space<vmem>>) attributes {dimension_semantics = [#tpu.dimension_semantics<parallel>, #tpu.dimension_semantics<parallel>, #tpu.dimension_semantics<arbitrary>], iteration_bounds = array<i64: 1, 1, 1>, scalar_prefetch = 0 : i64, scratch_operands = 1 : i64, tpu.core_type = #tpu.core_type<tc>, window_params = [{transform_indices = @transform_0, window_bounds = array<i64: 128, 128>}, {transform_indices = @transform_1, window_bounds = array<i64: 128, 512>}, {transform_indices = @transform_2, window_bounds = array<i64: 1, 512>}, {transform_indices = @transform_3, window_bounds = array<i64: 128, 512>}]} {
    %c0_i32 = arith.constant 0 : i32
    %0 = arith.cmpi eq, %arg2, %c0_i32 : i32
    %1 = arith.extui %0 : i1 to i32
    %c0_i32_0 = arith.constant 0 : i32
    %2 = arith.cmpi ne, %1, %c0_i32_0 : i32
    scf.if %2 {
      %cst_10 = arith.constant 0.000000e+00 : f32
      %12 = vector.broadcast %cst_10 : f32 to vector<128x512xf32>
      %c0_11 = arith.constant 0 : index
      %c0_12 = arith.constant 0 : index
      %13 = vector.load %arg7[%c0_11, %c0_12] : memref<128x512xf32, #tpu.memory_space<vmem>>, vector<128x512xf32>
      tpu.vector_store %arg7[%c0_11, %c0_12], %12 {strides = array<i32>} : memref<128x512xf32, #tpu.memory_space<vmem>>, vector<128x512xf32>,
    } else {
    }
    %c0 = arith.constant 0 : index
    %c0_1 = arith.constant 0 : index
    %3 = vector.load %arg7[%c0, %c0_1] : memref<128x512xf32, #tpu.memory_space<vmem>>, vector<128x512xf32>
    %c0_2 = arith.constant 0 : index
    %c0_3 = arith.constant 0 : index
    %4 = vector.load %arg3[%c0_2, %c0_3] : memref<128x128xbf16, #tpu.memory_space<vmem>>, vector<128x128xbf16>
    %c0_4 = arith.constant 0 : index
    %c0_5 = arith.constant 0 : index
    %5 = vector.load %arg4[%c0_4, %c0_5] : memref<128x512xbf16, #tpu.memory_space<vmem>>, vector<128x512xbf16>
    %cst = arith.constant dense<0.000000e+00> : vector<128x512xf32>
    %6 = tpu.matmul %4, %5, %cst {dimension_numbers = #tpu.dot_dimension_numbers<[1], [0], [0], [1], [0, 0, 1, 1], [], []>} : vector<128x128xbf16>, vector<128x512xbf16>, vector<128x512xf32> -> vector<128x512xf32>
    %7 = arith.addf %3, %6 : vector<128x512xf32>
    %c0_6 = arith.constant 0 : index
    %c0_7 = arith.constant 0 : index
    %8 = vector.load %arg7[%c0_6, %c0_7] : memref<128x512xf32, #tpu.memory_space<vmem>>, vector<128x512xf32>
    tpu.vector_store %arg7[%c0_6, %c0_7], %7 {strides = array<i32>} : memref<128x512xf32, #tpu.memory_space<vmem>>, vector<128x512xf32>,
    %c0_i32_8 = arith.constant 0 : i32
    %9 = arith.cmpi eq, %arg2, %c0_i32_8 : i32
    %10 = arith.extui %9 : i1 to i32
    %c0_i32_9 = arith.constant 0 : i32
    %11 = arith.cmpi ne, %10, %c0_i32_9 : i32
    scf.if %11 {
      %c0_10 = arith.constant 0 : index
      %c0_11 = arith.constant 0 : index
      %12 = vector.load %arg7[%c0_10, %c0_11] : memref<128x512xf32, #tpu.memory_space<vmem>>, vector<128x512xf32>
      %c0_12 = arith.constant 0 : index
      %c0_13 = arith.constant 0 : index
      %13 = vector.load %arg5[%c0_12, %c0_13] : memref<1x512xf32, #tpu.memory_space<vmem>>, vector<1x512xf32>
      %14 = vector.broadcast %13 : vector<1x512xf32> to vector<128x512xf32>
      %15 = arith.addf %12, %14 : vector<128x512xf32>
      %16 = arith.truncf %15 : vector<128x512xf32> to vector<128x512xbf16>
      %c0_14 = arith.constant 0 : index
      %c0_15 = arith.constant 0 : index
      %17 = vector.load %arg6[%c0_14, %c0_15] : memref<128x512xbf16, #tpu.memory_space<vmem>>, vector<128x512xbf16>
      tpu.vector_store %arg6[%c0_14, %c0_15], %16 {strides = array<i32>} : memref<128x512xbf16, #tpu.memory_space<vmem>>, vector<128x512xbf16>,
    } else {
    }
    return
  }
  func.func @transform_0(%arg0: i32, %arg1: i32, %arg2: i32) -> (i32, i32) {
    %c0_i32 = arith.constant 0 : i32
    return %arg0, %arg2 : i32, i32
  }
  func.func @transform_1(%arg0: i32, %arg1: i32, %arg2: i32) -> (i32, i32) {
    %c0_i32 = arith.constant 0 : i32
    return %arg2, %arg1 : i32, i32
  }
  func.func @transform_2(%arg0: i32, %arg1: i32, %arg2: i32) -> (i32, i32) {
    %c0_i32 = arith.constant 0 : i32
    %c0_i32_0 = arith.constant 0 : i32
    return %c0_i32, %arg1 : i32, i32
  }
  func.func @transform_3(%arg0: i32, %arg1: i32, %arg2: i32) -> (i32, i32) {
    %c0_i32 = arith.constant 0 : i32
    return %arg0, %arg1 : i32, i32
  }
}

</mosaic_0001>

<llo_original>
// kernel: tpu_custom_call.1
$region0: #{tpu_custom_call.1}
  #allocation0 [shape = 'u32[]', space=smem, size = 0x4, offset = 0x4, fixed_abs, tag = 'smem constant byte address 0x4 - core index']
  #allocation1 [shape = 'u32[144,128]{1,0:T(1,128)}', space=vmem, size = 0x12000, scoped, tag = 'internal scratch']
  #allocation2 [shape = 'f32[128,512]{1,0:T(8,128)}', space=vmem, size = 0x40000, scoped, tag = 'scratch operand']
  %s0 = inlined_call_operand.hbm [shape: bf16[128,128], index: 0, kind: input, shape index: {}]
  %s1 = inlined_call_operand.hbm [shape: bf16[128,512], index: 1, kind: input, shape index: {}]
  %s2 = inlined_call_operand.hbm [shape: f32[1,512], index: 2, kind: input, shape index: {}]
  %s3 = inlined_call_operand.hbm [shape: bf16[128,512], index: 3, kind: output, shape index: {}]
  %s4 = sld [smem:[#allocation0]]
  $region42: #{tpu_custom_call.1} parent=0
    _
  %s6 = ssub.s32 1, %s4
  %s7 = scalar_select 0, %s6, %s4
  $region1: #{tpu_custom_call.1} parent=0
    #allocation3 [shape = 'u8[32768]{0}', space=vmem, size = 0x8000, scoped, tag = 'input window, operand 0, single buffered']
    #allocation4 [shape = 's32[1]{0}', space=sflag, size = 0x4, scoped, tag = 'scoped memory for tpu_custom_call.1']
    #allocation5 [shape = 's32[1]{0}', space=sflag, size = 0x4, scoped, tag = 'scoped memory for tpu_custom_call.1']
    #allocation6 [shape = 'u8[131072]{0}', space=vmem, size = 0x20000, scoped, tag = 'input window, operand 1, single buffered']
    #allocation7 [shape = 's32[1]{0}', space=sflag, size = 0x4, scoped, tag = 'scoped memory for tpu_custom_call.1']
    #allocation8 [shape = 'u8[2048]{0}', space=vmem, size = 0x800, scoped, tag = 'input window, operand 2, single buffered']
    #allocation9 [shape = 'u8[131072]{0}', space=vmem, size = 0x20000, scoped, tag = 'output window, operand 0, single buffered']
    %8 = vsyncpa [#allocation4], 0
    %9 = vsyncpa [#allocation7], 0
    %10 = vsyncpa [#allocation5], 0
    // Predicated region
    $region2: #{tpu_custom_call.1} parent=1 // pred_check
      _
    $region3: #{tpu_custom_call.1} parent=1 // pred_check_branch
      %12 = sbr.rel (0) target = $region5
    $region4: #{tpu_custom_call.1} parent=1 // pred_region
      %s14 = ssub.s32 1024, 1024
      %15 = vsyncadd [#allocation4], %s14
      %s16 = sshll.u32 [#allocation3], 4
      %s17 = int_to_ptr.vmem [resolvable:$true] %s16
      %22 = dma.hbm_to_vmem [thread:$0]  %s0, 1024, %s17, [#allocation4], 64, 64, 4
    $region5: #{tpu_custom_call.1} parent=1 // pred_fallthru
      _
    // Predicated region
    $region6: #{tpu_custom_call.1} parent=1 // pred_check
      _
    $region7: #{tpu_custom_call.1} parent=1 // pred_check_branch
      %24 = sbr.rel (0) target = $region9
    $region8: #{tpu_custom_call.1} parent=1 // pred_region
      %s26 = ssub.s32 4096, 4096
      %27 = vsyncadd [#allocation7], %s26
      %s28 = sshll.u32 [#allocation6], 4
      %s29 = int_to_ptr.vmem [resolvable:$true] %s28
      %34 = dma.hbm_to_vmem [thread:$0]  %s1, 4096, %s29, [#allocation7], 256, 256, 16
    $region9: #{tpu_custom_call.1} parent=1 // pred_fallthru
      _
    // Predicated region
    $region10: #{tpu_custom_call.1} parent=1 // pred_check
      _
    $region11: #{tpu_custom_call.1} parent=1 // pred_check_branch
      %36 = sbr.rel (0) target = $region13
    $region12: #{tpu_custom_call.1} parent=1 // pred_region
      %s38 = ssub.s32 64, 64
      %39 = vsyncadd [#allocation7], %s38
      %s41 = sshll.u32 [#allocation8], 4
      %s42 = int_to_ptr.vmem [resolvable:$true] %s41
      %44 = dma.hbm_to_vmem [thread:$0]  %s2, 64, %s42, [#allocation7]
    $region13: #{tpu_custom_call.1} parent=1 // pred_fallthru
      _
    // Predicated region
    $region14: #{tpu_custom_call.1} parent=1 // pred_check
      _
    $region15: #{tpu_custom_call.1} parent=1 // pred_check_branch
      %46 = sbr.rel (0) target = $region17
    $region16: #{tpu_custom_call.1} parent=1 // pred_region
      %47 = dma.done [#allocation4], 1024
    $region17: #{tpu_custom_call.1} parent=1 // pred_fallthru
      _
    // Predicated region
    $region18: #{tpu_custom_call.1} parent=1 // pred_check
      _
    $region19: #{tpu_custom_call.1} parent=1 // pred_check_branch
      %49 = sbr.rel (0) target = $region21
    $region20: #{tpu_custom_call.1} parent=1 // pred_region
      %50 = dma.done [#allocation7], 4096
    $region21: #{tpu_custom_call.1} parent=1 // pred_fallthru
      _
    // Predicated region
    $region22: #{tpu_custom_call.1} parent=1 // pred_check
      _
    $region23: #{tpu_custom_call.1} parent=1 // pred_check_branch
      %52 = sbr.rel (0) target = $region25
    $region24: #{tpu_custom_call.1} parent=1 // pred_region
      %53 = dma.done [#allocation7], 64
    $region25: #{tpu_custom_call.1} parent=1 // pred_fallthru
      _
    %p55 = scmp.eq.s32.totalorder 0, 0
    // Predicated region
    $region26: #{tpu_custom_call.1} parent=1 // pred_check
      %p56 = pneg %p55
    $region27: #{tpu_custom_call.1} parent=1 // pred_check_branch
      %58 = sbr.rel (%p56) target = $region29
    $region28: #{tpu_custom_call.1} parent=1 // pred_region
      %59 = vst [vmem:[#allocation2] sm:$0xff] 0.0
      %60 = vst [vmem:[#allocation2 + $0x8] sm:$0xff] 0.0
      %61 = vst [vmem:[#allocation2 + $0x10] sm:$0xff] 0.0
      %62 = vst [vmem:[#allocation2 + $0x18] sm:$0xff] 0.0
      %63 = vst [vmem:[#allocation2 + $0x20] sm:$0xff] 0.0
      %64 = vst [vmem:[#allocation2 + $0x28] sm:$0xff] 0.0
      %65 = vst [vmem:[#allocation2 + $0x30] sm:$0xff] 0.0
      %66 = vst [vmem:[#allocation2 + $0x38] sm:$0xff] 0.0
      %67 = vst [vmem:[#allocation2 + $0x40] sm:$0xff] 0.0
      %68 = vst [vmem:[#allocation2 + $0x48] sm:$0xff] 0.0
      %69 = vst [vmem:[#allocation2 + $0x50] sm:$0xff] 0.0
      %70 = vst [vmem:[#allocation2 + $0x58] sm:$0xff] 0.0
      %71 = vst [vmem:[#allocation2 + $0x60] sm:$0xff] 0.0
      %72 = vst [vmem:[#allocation2 + $0x68] sm:$0xff] 0.0
      %73 = vst [vmem:[#allocation2 + $0x70] sm:$0xff] 0.0
      %74 = vst [vmem:[#allocation2 + $0x78] sm:$0xff] 0.0
      %75 = vst [vmem:[#allocation2 + $0x80] sm:$0xff] 0.0
      %76 = vst [vmem:[#allocation2 + $0x88] sm:$0xff] 0.0
      %77 = vst [vmem:[#allocation2 + $0x90] sm:$0xff] 0.0
      %78 = vst [vmem:[#allocation2 + $0x98] sm:$0xff] 0.0
      %79 = vst [vmem:[#allocation2 + $0xa0] sm:$0xff] 0.0
      %80 = vst [vmem:[#allocation2 + $0xa8] sm:$0xff] 0.0
      %81 = vst [vmem:[#allocation2 + $0xb0] sm:$0xff] 0.0
      %82 = vst [vmem:[#allocation2 + $0xb8] sm:$0xff] 0.0
      %83 = vst [vmem:[#allocation2 + $0xc0] sm:$0xff] 0.0
      %84 = vst [vmem:[#allocation2 + $0xc8] sm:$0xff] 0.0
      %85 = vst [vmem:[#allocation2 + $0xd0] sm:$0xff] 0.0
      %86 = vst [vmem:[#allocation2 + $0xd8] sm:$0xff] 0.0
      %87 = vst [vmem:[#allocation2 + $0xe0] sm:$0xff] 0.0
      %88 = vst [vmem:[#allocation2 + $0xe8] sm:$0xff] 0.0
      %89 = vst [vmem:[#allocation2 + $0xf0] sm:$0xff] 0.0
      %90 = vst [vmem:[#allocation2 + $0xf8] sm:$0xff] 0.0
      %91 = vst [vmem:[#allocation2 + $0x100] sm:$0xff] 0.0
      %92 = vst [vmem:[#allocation2 + $0x108] sm:$0xff] 0.0
      %93 = vst [vmem:[#allocation2 + $0x110] sm:$0xff] 0.0
      %94 = vst [vmem:[#allocation2 + $0x118] sm:$0xff] 0.0
      %95 = vst [vmem:[#allocation2 + $0x120] sm:$0xff] 0.0
      %96 = vst [vmem:[#allocation2 + $0x128] sm:$0xff] 0.0
      %97 = vst [vmem:[#allocation2 + $0x130] sm:$0xff] 0.0
      %98 = vst [vmem:[#allocation2 + $0x138] sm:$0xff] 0.0
      %99 = vst [vmem:[#allocation2 + $0x140] sm:$0xff] 0.0
      %100 = vst [vmem:[#allocation2 + $0x148] sm:$0xff] 0.0
      %101 = vst [vmem:[#allocation2 + $0x150] sm:$0xff] 0.0
      %102 = vst [vmem:[#allocation2 + $0x158] sm:$0xff] 0.0
      %103 = vst [vmem:[#allocation2 + $0x160] sm:$0xff] 0.0
      %104 = vst [vmem:[#allocation2 + $0x168] sm:$0xff] 0.0
      %105 = vst [vmem:[#allocation2 + $0x170] sm:$0xff] 0.0
      %106 = vst [vmem:[#allocation2 + $0x178] sm:$0xff] 0.0
      %107 = vst [vmem:[#allocation2 + $0x180] sm:$0xff] 0.0
      %108 = vst [vmem:[#allocation2 + $0x188] sm:$0xff] 0.0
      %109 = vst [vmem:[#allocation2 + $0x190] sm:$0xff] 0.0
      %110 = vst [vmem:[#allocation2 + $0x198] sm:$0xff] 0.0
      %111 = vst [vmem:[#allocation2 + $0x1a0] sm:$0xff] 0.0
      %112 = vst [vmem:[#allocation2 + $0x1a8] sm:$0xff] 0.0
      %113 = vst [vmem:[#allocation2 + $0x1b0] sm:$0xff] 0.0
      %114 = vst [vmem:[#allocation2 + $0x1b8] sm:$0xff] 0.0
      %115 = vst [vmem:[#allocation2 + $0x1c0] sm:$0xff] 0.0
      %116 = vst [vmem:[#allocation2 + $0x1c8] sm:$0xff] 0.0
      %117 = vst [vmem:[#allocation2 + $0x1d0] sm:$0xff] 0.0
      %118 = vst [vmem:[#allocation2 + $0x1d8] sm:$0xff] 0.0
      %119 = vst [vmem:[#allocation2 + $0x1e0] sm:$0xff] 0.0
      %120 = vst [vmem:[#allocation2 + $0x1e8] sm:$0xff] 0.0
      %121 = vst [vmem:[#allocation2 + $0x1f0] sm:$0xff] 0.0
      %122 = vst [vmem:[#allocation2 + $0x1f8] sm:$0xff] 0.0
    $region29: #{tpu_custom_call.1} parent=1 // pred_fallthru
      _
    %v123 = vld [vmem:[#allocation2] sm:$0xff]
    %v124 = vld [vmem:[#allocation2 + $0x8] sm:$0xff]
    %v125 = vld [vmem:[#allocation2 + $0x10] sm:$0xff]
    %v126 = vld [vmem:[#allocation2 + $0x18] sm:$0xff]
    %v127 = vld [vmem:[#allocation2 + $0x20] sm:$0xff]
    %v128 = vld [vmem:[#allocation2 + $0x28] sm:$0xff]
    %v129 = vld [vmem:[#allocation2 + $0x30] sm:$0xff]
    %v130 = vld [vmem:[#allocation2 + $0x38] sm:$0xff]
    %v131 = vld [vmem:[#allocation2 + $0x40] sm:$0xff]
    %v132 = vld [vmem:[#allocation2 + $0x48] sm:$0xff]
    %v133 = vld [vmem:[#allocation2 + $0x50] sm:$0xff]
    %v134 = vld [vmem:[#allocation2 + $0x58] sm:$0xff]
    %v135 = vld [vmem:[#allocation2 + $0x60] sm:$0xff]
    %v136 = vld [vmem:[#allocation2 + $0x68] sm:$0xff]
    %v137 = vld [vmem:[#allocation2 + $0x70] sm:$0xff]
    %v138 = vld [vmem:[#allocation2 + $0x78] sm:$0xff]
    %v139 = vld [vmem:[#allocation2 + $0x80] sm:$0xff]
    %v140 = vld [vmem:[#allocation2 + $0x88] sm:$0xff]
    %v141 = vld [vmem:[#allocation2 + $0x90] sm:$0xff]
    %v142 = vld [vmem:[#allocation2 + $0x98] sm:$0xff]
    %v143 = vld [vmem:[#allocation2 + $0xa0] sm:$0xff]
    %v144 = vld [vmem:[#allocation2 + $0xa8] sm:$0xff]
    %v145 = vld [vmem:[#allocation2 + $0xb0] sm:$0xff]
    %v146 = vld [vmem:[#allocation2 + $0xb8] sm:$0xff]
    %v147 = vld [vmem:[#allocation2 + $0xc0] sm:$0xff]
    %v148 = vld [vmem:[#allocation2 + $0xc8] sm:$0xff]
    %v149 = vld [vmem:[#allocation2 + $0xd0] sm:$0xff]
    %v150 = vld [vmem:[#allocation2 + $0xd8] sm:$0xff]
    %v151 = vld [vmem:[#allocation2 + $0xe0] sm:$0xff]
    %v152 = vld [vmem:[#allocation2 + $0xe8] sm:$0xff]
    %v153 = vld [vmem:[#allocation2 + $0xf0] sm:$0xff]
    %v154 = vld [vmem:[#allocation2 + $0xf8] sm:$0xff]
    %v155 = vld [vmem:[#allocation2 + $0x100] sm:$0xff]
    %v156 = vld [vmem:[#allocation2 + $0x108] sm:$0xff]
    %v157 = vld [vmem:[#allocation2 + $0x110] sm:$0xff]
    %v158 = vld [vmem:[#allocation2 + $0x118] sm:$0xff]
    %v159 = vld [vmem:[#allocation2 + $0x120] sm:$0xff]
    %v160 = vld [vmem:[#allocation2 + $0x128] sm:$0xff]
    %v161 = vld [vmem:[#allocation2 + $0x130] sm:$0xff]
    %v162 = vld [vmem:[#allocation2 + $0x138] sm:$0xff]
    %v163 = vld [vmem:[#allocation2 + $0x140] sm:$0xff]
    %v164 = vld [vmem:[#allocation2 + $0x148] sm:$0xff]
    %v165 = vld [vmem:[#allocation2 + $0x150] sm:$0xff]
    %v166 = vld [vmem:[#allocation2 + $0x158] sm:$0xff]
    %v167 = vld [vmem:[#allocation2 + $0x160] sm:$0xff]
    %v168 = vld [vmem:[#allocation2 + $0x168] sm:$0xff]
    %v169 = vld [vmem:[#allocation2 + $0x170] sm:$0xff]
    %v170 = vld [vmem:[#allocation2 + $0x178] sm:$0xff]
    %v171 = vld [vmem:[#allocation2 + $0x180] sm:$0xff]
    %v172 = vld [vmem:[#allocation2 + $0x188] sm:$0xff]
    %v173 = vld [vmem:[#allocation2 + $0x190] sm:$0xff]
    %v174 = vld [vmem:[#allocation2 + $0x198] sm:$0xff]
    %v175 = vld [vmem:[#allocation2 + $0x1a0] sm:$0xff]
    %v176 = vld [vmem:[#allocation2 + $0x1a8] sm:$0xff]
    %v177 = vld [vmem:[#allocation2 + $0x1b0] sm:$0xff]
    %v178 = vld [vmem:[#allocation2 + $0x1b8] sm:$0xff]
    %v179 = vld [vmem:[#allocation2 + $0x1c0] sm:$0xff]
    %v180 = vld [vmem:[#allocation2 + $0x1c8] sm:$0xff]
    %v181 = vld [vmem:[#allocation2 + $0x1d0] sm:$0xff]
    %v182 = vld [vmem:[#allocation2 + $0x1d8] sm:$0xff]
    %v183 = vld [vmem:[#allocation2 + $0x1e0] sm:$0xff]
    %v184 = vld [vmem:[#allocation2 + $0x1e8] sm:$0xff]
    %v185 = vld [vmem:[#allocation2 + $0x1f0] sm:$0xff]
    %v186 = vld [vmem:[#allocation2 + $0x1f8] sm:$0xff]
    %v187 = vld [vmem:[#allocation3] sm:$0xf]
    %v188 = vld [vmem:[#allocation3 + $0x4] sm:$0xf]
    %v189 = vld [vmem:[#allocation3 + $0x8] sm:$0xf]
    %v190 = vld [vmem:[#allocation3 + $0xc] sm:$0xf]
    %v191 = vld [vmem:[#allocation3 + $0x10] sm:$0xf]
    %v192 = vld [vmem:[#allocation3 + $0x14] sm:$0xf]
    %v193 = vld [vmem:[#allocation3 + $0x18] sm:$0xf]
    %v194 = vld [vmem:[#allocation3 + $0x1c] sm:$0xf]
    %v195 = vld [vmem:[#allocation3 + $0x20] sm:$0xf]
    %v196 = vld [vmem:[#allocation3 + $0x24] sm:$0xf]
    %v197 = vld [vmem:[#allocation3 + $0x28] sm:$0xf]
    %v198 = vld [vmem:[#allocation3 + $0x2c] sm:$0xf]
    %v199 = vld [vmem:[#allocation3 + $0x30] sm:$0xf]
    %v200 = vld [vmem:[#allocation3 + $0x34] sm:$0xf]
    %v201 = vld [vmem:[#allocation3 + $0x38] sm:$0xf]
    %v202 = vld [vmem:[#allocation3 + $0x3c] sm:$0xf]
    %v203 = vld [vmem:[#allocation6] sm:$0xff]
    %v204 = vld [vmem:[#allocation6 + $0x8] sm:$0xff]
    %v205 = vld [vmem:[#allocation6 + $0x10] sm:$0xff]
    %v206 = vld [vmem:[#allocation6 + $0x18] sm:$0xff]
    %v207 = vld [vmem:[#allocation6 + $0x20] sm:$0xff]
    %v208 = vld [vmem:[#allocation6 + $0x28] sm:$0xff]
    %v209 = vld [vmem:[#allocation6 + $0x30] sm:$0xff]
    %v210 = vld [vmem:[#allocation6 + $0x38] sm:$0xff]
    %v211 = vld [vmem:[#allocation6 + $0x40] sm:$0xff]
    %v212 = vld [vmem:[#allocation6 + $0x48] sm:$0xff]
    %v213 = vld [vmem:[#allocation6 + $0x50] sm:$0xff]
    %v214 = vld [vmem:[#allocation6 + $0x58] sm:$0xff]
    %v215 = vld [vmem:[#allocation6 + $0x60] sm:$0xff]
    %v216 = vld [vmem:[#allocation6 + $0x68] sm:$0xff]
    %v217 = vld [vmem:[#allocation6 + $0x70] sm:$0xff]
    %v218 = vld [vmem:[#allocation6 + $0x78] sm:$0xff]
    %v219 = vld [vmem:[#allocation6 + $0x80] sm:$0xff]
    %v220 = vld [vmem:[#allocation6 + $0x88] sm:$0xff]
    %v221 = vld [vmem:[#allocation6 + $0x90] sm:$0xff]
    %v222 = vld [vmem:[#allocation6 + $0x98] sm:$0xff]
    %v223 = vld [vmem:[#allocation6 + $0xa0] sm:$0xff]
    %v224 = vld [vmem:[#allocation6 + $0xa8] sm:$0xff]
    %v225 = vld [vmem:[#allocation6 + $0xb0] sm:$0xff]
    %v226 = vld [vmem:[#allocation6 + $0xb8] sm:$0xff]
    %v227 = vld [vmem:[#allocation6 + $0xc0] sm:$0xff]
    %v228 = vld [vmem:[#allocation6 + $0xc8] sm:$0xff]
    %v229 = vld [vmem:[#allocation6 + $0xd0] sm:$0xff]
    %v230 = vld [vmem:[#allocation6 + $0xd8] sm:$0xff]
    %v231 = vld [vmem:[#allocation6 + $0xe0] sm:$0xff]
    %v232 = vld [vmem:[#allocation6 + $0xe8] sm:$0xff]
    %v233 = vld [vmem:[#allocation6 + $0xf0] sm:$0xff]
    %v234 = vld [vmem:[#allocation6 + $0xf8] sm:$0xff]
    %v251 = vunpack.c.l.b16 %v187
    %v252 = vunpack.c.l.b16 %v188
    %v253 = vunpack.c.l.b16 %v189
    %v254 = vunpack.c.l.b16 %v190
    %v255 = vunpack.c.l.b16 %v191
    %v256 = vunpack.c.l.b16 %v192
    %v257 = vunpack.c.l.b16 %v193
    %v258 = vunpack.c.l.b16 %v194
    %v259 = vunpack.c.l.b16 %v195
    %v260 = vunpack.c.l.b16 %v196
    %v261 = vunpack.c.l.b16 %v197
    %v262 = vunpack.c.l.b16 %v198
    %v263 = vunpack.c.l.b16 %v199
    %v264 = vunpack.c.l.b16 %v200
    %v265 = vunpack.c.l.b16 %v201
    %v266 = vunpack.c.l.b16 %v202
    %v267 = vpack.c.b16 %v252, %v251
    %v268 = vpack.c.b16 %v254, %v253
    %v269 = vpack.c.b16 %v256, %v255
    %v270 = vpack.c.b16 %v258, %v257
    %v271 = vpack.c.b16 %v260, %v259
    %v272 = vpack.c.b16 %v262, %v261
    %v273 = vpack.c.b16 %v264, %v263
    %v274 = vpack.c.b16 %v266, %v265
    %v315 = vunpack.c.l.b16 %v203
    %v316 = vunpack.c.h.b16 %v203
    %v317 = vunpack.c.l.b16 %v204
    %v318 = vunpack.c.h.b16 %v204
    %v319 = vunpack.c.l.b16 %v205
    %v320 = vunpack.c.h.b16 %v205
    %v321 = vunpack.c.l.b16 %v206
    %v322 = vunpack.c.h.b16 %v206
    %v323 = vunpack.c.l.b16 %v207
    %v324 = vunpack.c.h.b16 %v207
    %v325 = vunpack.c.l.b16 %v208
    %v326 = vunpack.c.h.b16 %v208
    %v327 = vunpack.c.l.b16 %v209
    %v328 = vunpack.c.h.b16 %v209
    %v329 = vunpack.c.l.b16 %v210
    %v330 = vunpack.c.h.b16 %v210
    %v331 = vunpack.c.l.b16 %v211
    %v332 = vunpack.c.h.b16 %v211
    %v333 = vunpack.c.l.b16 %v212
    %v334 = vunpack.c.h.b16 %v212
    %v335 = vunpack.c.l.b16 %v213
    %v336 = vunpack.c.h.b16 %v213
    %v337 = vunpack.c.l.b16 %v214
    %v338 = vunpack.c.h.b16 %v214
    %v339 = vunpack.c.l.b16 %v215
    %v340 = vunpack.c.h.b16 %v215
    %v341 = vunpack.c.l.b16 %v216
    %v342 = vunpack.c.h.b16 %v216
    %v343 = vunpack.c.l.b16 %v217
    %v344 = vunpack.c.h.b16 %v217
    %v345 = vunpack.c.l.b16 %v218
    %v346 = vunpack.c.h.b16 %v218
    %v347 = vunpack.c.l.b16 %v219
    %v348 = vunpack.c.h.b16 %v219
    %v349 = vunpack.c.l.b16 %v220
    %v350 = vunpack.c.h.b16 %v220
    %v351 = vunpack.c.l.b16 %v221
    %v352 = vunpack.c.h.b16 %v221
    %v353 = vunpack.c.l.b16 %v222
    %v354 = vunpack.c.h.b16 %v222
    %v355 = vunpack.c.l.b16 %v223
    %v356 = vunpack.c.h.b16 %v223
    %v357 = vunpack.c.l.b16 %v224
    %v358 = vunpack.c.h.b16 %v224
    %v359 = vunpack.c.l.b16 %v225
    %v360 = vunpack.c.h.b16 %v225
    %v361 = vunpack.c.l.b16 %v226
    %v362 = vunpack.c.h.b16 %v226
    %v363 = vunpack.c.l.b16 %v227
    %v364 = vunpack.c.h.b16 %v227
    %v365 = vunpack.c.l.b16 %v228
    %v366 = vunpack.c.h.b16 %v228
    %v367 = vunpack.c.l.b16 %v229
    %v368 = vunpack.c.h.b16 %v229
    %v369 = vunpack.c.l.b16 %v230
    %v370 = vunpack.c.h.b16 %v230
    %v371 = vunpack.c.l.b16 %v231
    %v372 = vunpack.c.h.b16 %v231
    %v373 = vunpack.c.l.b16 %v232
    %v374 = vunpack.c.h.b16 %v232
    %v375 = vunpack.c.l.b16 %v233
    %v376 = vunpack.c.h.b16 %v233
    %v377 = vunpack.c.l.b16 %v234
    %v378 = vunpack.c.h.b16 %v234
    %v379 = vpack.c.b16 %v319, %v315
    %v380 = vpack.c.b16 %v320, %v316
    %v381 = vpack.c.b16 %v321, %v317
    %v382 = vpack.c.b16 %v322, %v318
    %v383 = vpack.c.b16 %v327, %v323
    %v384 = vpack.c.b16 %v328, %v324
    %v385 = vpack.c.b16 %v329, %v325
    %v386 = vpack.c.b16 %v330, %v326
    %v387 = vpack.c.b16 %v335, %v331
    %v388 = vpack.c.b16 %v336, %v332
    %v389 = vpack.c.b16 %v337, %v333
    %v390 = vpack.c.b16 %v338, %v334
    %v391 = vpack.c.b16 %v343, %v339
    %v392 = vpack.c.b16 %v344, %v340
    %v393 = vpack.c.b16 %v345, %v341
    %v394 = vpack.c.b16 %v346, %v342
    %v395 = vpack.c.b16 %v351, %v347
    %v396 = vpack.c.b16 %v352, %v348
    %v397 = vpack.c.b16 %v353, %v349
    %v398 = vpack.c.b16 %v354, %v350
    %v399 = vpack.c.b16 %v359, %v355
    %v400 = vpack.c.b16 %v360, %v356
    %v401 = vpack.c.b16 %v361, %v357
    %v402 = vpack.c.b16 %v362, %v358
    %v403 = vpack.c.b16 %v367, %v363
    %v404 = vpack.c.b16 %v368, %v364
    %v405 = vpack.c.b16 %v369, %v365
    %v406 = vpack.c.b16 %v370, %v366
    %v407 = vpack.c.b16 %v375, %v371
    %v408 = vpack.c.b16 %v376, %v372
    %v409 = vpack.c.b16 %v377, %v373
    %v410 = vpack.c.b16 %v378, %v374
    %443 = vmatprep.subr.bf16.mxu0 %v408
    %444 = vmatpush1.bf16.msra.mxu0 %v407
    %445 = vmatprep.subr.bf16.mxu0 %v404
    %446 = vmatpush1.bf16.msra.mxu0 %v403
    %447 = vmatprep.subr.bf16.mxu0 %v400
    %448 = vmatpush1.bf16.msra.mxu0 %v399
    %449 = vmatprep.subr.bf16.mxu0 %v396
    %450 = vmatpush1.bf16.msra.mxu0 %v395
    %451 = vmatprep.subr.bf16.mxu0 %v392
    %452 = vmatpush1.bf16.msra.mxu0 %v391
    %453 = vmatprep.subr.bf16.mxu0 %v388
    %454 = vmatpush1.bf16.msra.mxu0 %v387
    %455 = vmatprep.subr.bf16.mxu0 %v384
    %456 = vmatpush1.bf16.msra.mxu0 %v383
    %457 = vmatprep.subr.bf16.mxu0 %v380
    %458 = vmatpush1.bf16.msra.mxu0 %v379
    %459 = vmatprep.subr.bf16.mxu0 0
    %460 = vmatpush2.bf16.msra.mxu0 0
    %461 = vmatprep.subr.bf16.mxu0 0
    %462 = vmatpush2.bf16.msra.mxu0 0
    %463 = vmatprep.subr.bf16.mxu0 0
    %464 = vmatpush2.bf16.msra.mxu0 0
    %465 = vmatprep.subr.bf16.mxu0 0
    %466 = vmatpush2.bf16.msra.mxu0 0
    %467 = vmatprep.subr.bf16.mxu0 0
    %468 = vmatpush2.bf16.msra.mxu0 0
    %469 = vmatprep.subr.bf16.mxu0 0
    %470 = vmatpush2.bf16.msra.mxu0 0
    %471 = vmatprep.subr.bf16.mxu0 0
    %472 = vmatpush2.bf16.msra.mxu0 0
    %473 = vmatprep.subr.bf16.mxu0 0
    %474 = vmatpush2.bf16.msra.mxu0 0
    %475 = vmatprep.mubr.bf16.mxu0 0
    %476 = vmatmul.mubr.bf16.gmra.mxu0 %v267
    %v477 = vpop.f32.mrf.mxu0
    %v478 = vadd.f32 0.0, %v477
    %v479 = vpop.f32.mrf.mxu0
    %v480 = vadd.f32 0.0, %v479
    %v481 = vpop.f32.mrf.mxu0
    %v482 = vadd.f32 0.0, %v481
    %v483 = vpop.f32.mrf.mxu0
    %v484 = vadd.f32 0.0, %v483
    %485 = vmatprep.mubr.bf16.mxu0 0
    %486 = vmatmul.mubr.bf16.gmra.mxu0 %v268
    %v487 = vpop.f32.mrf.mxu0
    %v488 = vadd.f32 0.0, %v487
    %v489 = vpop.f32.mrf.mxu0
    %v490 = vadd.f32 0.0, %v489
    %v491 = vpop.f32.mrf.mxu0
    %v492 = vadd.f32 0.0, %v491
    %v493 = vpop.f32.mrf.mxu0
    %v494 = vadd.f32 0.0, %v493
    %495 = vmatprep.mubr.bf16.mxu0 0
    %496 = vmatmul.mubr.bf16.gmra.mxu0 %v269
    %v497 = vpop.f32.mrf.mxu0
    %v498 = vadd.f32 0.0, %v497
    %v499 = vpop.f32.mrf.mxu0
    %v500 = vadd.f32 0.0, %v499
    %v501 = vpop.f32.mrf.mxu0
    %v502 = vadd.f32 0.0, %v501
    %v503 = vpop.f32.mrf.mxu0
    %v504 = vadd.f32 0.0, %v503
    %505 = vmatprep.mubr.bf16.mxu0 0
    %506 = vmatmul.mubr.bf16.gmra.mxu0 %v270
    %v507 = vpop.f32.mrf.mxu0
    %v508 = vadd.f32 0.0, %v507
    %v509 = vpop.f32.mrf.mxu0
    %v510 = vadd.f32 0.0, %v509
    %v511 = vpop.f32.mrf.mxu0
    %v512 = vadd.f32 0.0, %v511
    %v513 = vpop.f32.mrf.mxu0
    %v514 = vadd.f32 0.0, %v513
    %515 = vmatprep.mubr.bf16.mxu0 0
    %516 = vmatmul.mubr.bf16.gmra.mxu0 %v271
    %v517 = vpop.f32.mrf.mxu0
    %v518 = vadd.f32 0.0, %v517
    %v519 = vpop.f32.mrf.mxu0
    %v520 = vadd.f32 0.0, %v519
    %v521 = vpop.f32.mrf.mxu0
    %v522 = vadd.f32 0.0, %v521
    %v523 = vpop.f32.mrf.mxu0
    %v524 = vadd.f32 0.0, %v523
    %525 = vmatprep.mubr.bf16.mxu0 0
    %526 = vmatmul.mubr.bf16.gmra.mxu0 %v272
    %v527 = vpop.f32.mrf.mxu0
    %v528 = vadd.f32 0.0, %v527
    %v529 = vpop.f32.mrf.mxu0
    %v530 = vadd.f32 0.0, %v529
    %v531 = vpop.f32.mrf.mxu0
    %v532 = vadd.f32 0.0, %v531
    %v533 = vpop.f32.mrf.mxu0
    %v534 = vadd.f32 0.0, %v533
    %535 = vmatprep.mubr.bf16.mxu0 0
    %536 = vmatmul.mubr.bf16.gmra.mxu0 %v273
    %v537 = vpop.f32.mrf.mxu0
    %v538 = vadd.f32 0.0, %v537
    %v539 = vpop.f32.mrf.mxu0
    %v540 = vadd.f32 0.0, %v539
    %v541 = vpop.f32.mrf.mxu0
    %v542 = vadd.f32 0.0, %v541
    %v543 = vpop.f32.mrf.mxu0
    %v544 = vadd.f32 0.0, %v543
    %545 = vmatprep.mubr.bf16.mxu0 0
    %546 = vmatmul.mubr.bf16.gmra.mxu0 %v274
    %v547 = vpop.f32.mrf.mxu0
    %v548 = vadd.f32 0.0, %v547
    %v549 = vpop.f32.mrf.mxu0
    %v550 = vadd.f32 0.0, %v549
    %v551 = vpop.f32.mrf.mxu0
    %v552 = vadd.f32 0.0, %v551
    %v553 = vpop.f32.mrf.mxu0
    %v554 = vadd.f32 0.0, %v553
    %555 = vdwg.mxu0
    %556 = vmatprep.subr.bf16.mxu0 %v410
    %557 = vmatpush1.bf16.msra.mxu0 %v409
    %558 = vmatprep.subr.bf16.mxu0 %v406
    %559 = vmatpush1.bf16.msra.mxu0 %v405
    %560 = vmatprep.subr.bf16.mxu0 %v402
    %561 = vmatpush1.bf16.msra.mxu0 %v401
    %562 = vmatprep.subr.bf16.mxu0 %v398
    %563 = vmatpush1.bf16.msra.mxu0 %v397
    %564 = vmatprep.subr.bf16.mxu0 %v394
    %565 = vmatpush1.bf16.msra.mxu0 %v393
    %566 = vmatprep.subr.bf16.mxu0 %v390
    %567 = vmatpush1.bf16.msra.mxu0 %v389
    %568 = vmatprep.subr.bf16.mxu0 %v386
    %569 = vmatpush1.bf16.msra.mxu0 %v385
    %570 = vmatprep.subr.bf16.mxu0 %v382
    %571 = vmatpush1.bf16.msra.mxu0 %v381
    %572 = vmatprep.subr.bf16.mxu0 0
    %573 = vmatpush2.bf16.msra.mxu0 0
    %574 = vmatprep.subr.bf16.mxu0 0
    %575 = vmatpush2.bf16.msra.mxu0 0
    %576 = vmatprep.subr.bf16.mxu0 0
    %577 = vmatpush2.bf16.msra.mxu0 0
    %578 = vmatprep.subr.bf16.mxu0 0
    %579 = vmatpush2.bf16.msra.mxu0 0
    %580 = vmatprep.subr.bf16.mxu0 0
    %581 = vmatpush2.bf16.msra.mxu0 0
    %582 = vmatprep.subr.bf16.mxu0 0
    %583 = vmatpush2.bf16.msra.mxu0 0
    %584 = vmatprep.subr.bf16.mxu0 0
    %585 = vmatpush2.bf16.msra.mxu0 0
    %586 = vmatprep.subr.bf16.mxu0 0
    %587 = vmatpush2.bf16.msra.mxu0 0
    %588 = vmatprep.mubr.bf16.mxu0 0
    %589 = vmatmul.mubr.bf16.gmra.mxu0 %v267
    %v590 = vpop.f32.mrf.mxu0
    %v591 = vadd.f32 0.0, %v590
    %v592 = vpop.f32.mrf.mxu0
    %v593 = vadd.f32 0.0, %v592
    %v594 = vpop.f32.mrf.mxu0
    %v595 = vadd.f32 0.0, %v594
    %v596 = vpop.f32.mrf.mxu0
    %v597 = vadd.f32 0.0, %v596
    %598 = vmatprep.mubr.bf16.mxu0 0
    %599 = vmatmul.mubr.bf16.gmra.mxu0 %v268
    %v600 = vpop.f32.mrf.mxu0
    %v601 = vadd.f32 0.0, %v600
    %v602 = vpop.f32.mrf.mxu0
    %v603 = vadd.f32 0.0, %v602
    %v604 = vpop.f32.mrf.mxu0
    %v605 = vadd.f32 0.0, %v604
    %v606 = vpop.f32.mrf.mxu0
    %v607 = vadd.f32 0.0, %v606
    %608 = vmatprep.mubr.bf16.mxu0 0
    %609 = vmatmul.mubr.bf16.gmra.mxu0 %v269
    %v610 = vpop.f32.mrf.mxu0
    %v611 = vadd.f32 0.0, %v610
    %v612 = vpop.f32.mrf.mxu0
    %v613 = vadd.f32 0.0, %v612
    %v614 = vpop.f32.mrf.mxu0
    %v615 = vadd.f32 0.0, %v614
    %v616 = vpop.f32.mrf.mxu0
    %v617 = vadd.f32 0.0, %v616
    %618 = vmatprep.mubr.bf16.mxu0 0
    %619 = vmatmul.mubr.bf16.gmra.mxu0 %v270
    %v620 = vpop.f32.mrf.mxu0
    %v621 = vadd.f32 0.0, %v620
    %v622 = vpop.f32.mrf.mxu0
    %v623 = vadd.f32 0.0, %v622
    %v624 = vpop.f32.mrf.mxu0
    %v625 = vadd.f32 0.0, %v624
    %v626 = vpop.f32.mrf.mxu0
    %v627 = vadd.f32 0.0, %v626
    %628 = vmatprep.mubr.bf16.mxu0 0
    %629 = vmatmul.mubr.bf16.gmra.mxu0 %v271
    %v630 = vpop.f32.mrf.mxu0
    %v631 = vadd.f32 0.0, %v630
    %v632 = vpop.f32.mrf.mxu0
    %v633 = vadd.f32 0.0, %v632
    %v634 = vpop.f32.mrf.mxu0
    %v635 = vadd.f32 0.0, %v634
    %v636 = vpop.f32.mrf.mxu0
    %v637 = vadd.f32 0.0, %v636
    %638 = vmatprep.mubr.bf16.mxu0 0
    %639 = vmatmul.mubr.bf16.gmra.mxu0 %v272
    %v640 = vpop.f32.mrf.mxu0
    %v641 = vadd.f32 0.0, %v640
    %v642 = vpop.f32.mrf.mxu0
    %v643 = vadd.f32 0.0, %v642
    %v644 = vpop.f32.mrf.mxu0
    %v645 = vadd.f32 0.0, %v644
    %v646 = vpop.f32.mrf.mxu0
    %v647 = vadd.f32 0.0, %v646
    %648 = vmatprep.mubr.bf16.mxu0 0
    %649 = vmatmul.mubr.bf16.gmra.mxu0 %v273
    %v650 = vpop.f32.mrf.mxu0
    %v651 = vadd.f32 0.0, %v650
    %v652 = vpop.f32.mrf.mxu0
    %v653 = vadd.f32 0.0, %v652
    %v654 = vpop.f32.mrf.mxu0
    %v655 = vadd.f32 0.0, %v654
    %v656 = vpop.f32.mrf.mxu0
    %v657 = vadd.f32 0.0, %v656
    %658 = vmatprep.mubr.bf16.mxu0 0
    %659 = vmatmul.mubr.bf16.gmra.mxu0 %v274
    %v660 = vpop.f32.mrf.mxu0
    %v661 = vadd.f32 0.0, %v660
    %v662 = vpop.f32.mrf.mxu0
    %v663 = vadd.f32 0.0, %v662
    %v664 = vpop.f32.mrf.mxu0
    %v665 = vadd.f32 0.0, %v664
    %v666 = vpop.f32.mrf.mxu0
    %v667 = vadd.f32 0.0, %v666
    %668 = vdwg.mxu0
    %v669 = vadd.f32 %v123, %v478
    %v670 = vadd.f32 %v124, %v480
    %v671 = vadd.f32 %v125, %v591
    %v672 = vadd.f32 %v126, %v593
    %v673 = vadd.f32 %v127, %v482
    %v674 = vadd.f32 %v128, %v484
    %v675 = vadd.f32 %v129, %v595
    %v676 = vadd.f32 %v130, %v597
    %v677 = vadd.f32 %v131, %v488
    %v678 = vadd.f32 %v132, %v490
    %v679 = vadd.f32 %v133, %v601
    %v680 = vadd.f32 %v134, %v603
    %v681 = vadd.f32 %v135, %v492
    %v682 = vadd.f32 %v136, %v494
    %v683 = vadd.f32 %v137, %v605
    %v684 = vadd.f32 %v138, %v607
    %v685 = vadd.f32 %v139, %v498
    %v686 = vadd.f32 %v140, %v500
    %v687 = vadd.f32 %v141, %v611
    %v688 = vadd.f32 %v142, %v613
    %v689 = vadd.f32 %v143, %v502
    %v690 = vadd.f32 %v144, %v504
    %v691 = vadd.f32 %v145, %v615
    %v692 = vadd.f32 %v146, %v617
    %v693 = vadd.f32 %v147, %v508
    %v694 = vadd.f32 %v148, %v510
    %v695 = vadd.f32 %v149, %v621
    %v696 = vadd.f32 %v150, %v623
    %v697 = vadd.f32 %v151, %v512
    %v698 = vadd.f32 %v152, %v514
    %v699 = vadd.f32 %v153, %v625
    %v700 = vadd.f32 %v154, %v627
    %v701 = vadd.f32 %v155, %v518
    %v702 = vadd.f32 %v156, %v520
    %v703 = vadd.f32 %v157, %v631
    %v704 = vadd.f32 %v158, %v633
    %v705 = vadd.f32 %v159, %v522
    %v706 = vadd.f32 %v160, %v524
    %v707 = vadd.f32 %v161, %v635
    %v708 = vadd.f32 %v162, %v637
    %v709 = vadd.f32 %v163, %v528
    %v710 = vadd.f32 %v164, %v530
    %v711 = vadd.f32 %v165, %v641
    %v712 = vadd.f32 %v166, %v643
    %v713 = vadd.f32 %v167, %v532
    %v714 = vadd.f32 %v168, %v534
    %v715 = vadd.f32 %v169, %v645
    %v716 = vadd.f32 %v170, %v647
    %v717 = vadd.f32 %v171, %v538
    %v718 = vadd.f32 %v172, %v540
    %v719 = vadd.f32 %v173, %v651
    %v720 = vadd.f32 %v174, %v653
    %v721 = vadd.f32 %v175, %v542
    %v722 = vadd.f32 %v176, %v544
    %v723 = vadd.f32 %v177, %v655
    %v724 = vadd.f32 %v178, %v657
    %v725 = vadd.f32 %v179, %v548
    %v726 = vadd.f32 %v180, %v550
    %v727 = vadd.f32 %v181, %v661
    %v728 = vadd.f32 %v182, %v663
    %v729 = vadd.f32 %v183, %v552
    %v730 = vadd.f32 %v184, %v554
    %v731 = vadd.f32 %v185, %v665
    %v732 = vadd.f32 %v186, %v667
    %733 = vst [vmem:[#allocation2] sm:$0xff] %v669
    %734 = vst [vmem:[#allocation2 + $0x8] sm:$0xff] %v670
    %735 = vst [vmem:[#allocation2 + $0x10] sm:$0xff] %v671
    %736 = vst [vmem:[#allocation2 + $0x18] sm:$0xff] %v672
    %737 = vst [vmem:[#allocation2 + $0x20] sm:$0xff] %v673
    %738 = vst [vmem:[#allocation2 + $0x28] sm:$0xff] %v674
    %739 = vst [vmem:[#allocation2 + $0x30] sm:$0xff] %v675
    %740 = vst [vmem:[#allocation2 + $0x38] sm:$0xff] %v676
    %741 = vst [vmem:[#allocation2 + $0x40] sm:$0xff] %v677
    %742 = vst [vmem:[#allocation2 + $0x48] sm:$0xff] %v678
    %743 = vst [vmem:[#allocation2 + $0x50] sm:$0xff] %v679
    %744 = vst [vmem:[#allocation2 + $0x58] sm:$0xff] %v680
    %745 = vst [vmem:[#allocation2 + $0x60] sm:$0xff] %v681
    %746 = vst [vmem:[#allocation2 + $0x68] sm:$0xff] %v682
    %747 = vst [vmem:[#allocation2 + $0x70] sm:$0xff] %v683
    %748 = vst [vmem:[#allocation2 + $0x78] sm:$0xff] %v684
    %749 = vst [vmem:[#allocation2 + $0x80] sm:$0xff] %v685
    %750 = vst [vmem:[#allocation2 + $0x88] sm:$0xff] %v686
    %751 = vst [vmem:[#allocation2 + $0x90] sm:$0xff] %v687
    %752 = vst [vmem:[#allocation2 + $0x98] sm:$0xff] %v688
    %753 = vst [vmem:[#allocation2 + $0xa0] sm:$0xff] %v689
    %754 = vst [vmem:[#allocation2 + $0xa8] sm:$0xff] %v690
    %755 = vst [vmem:[#allocation2 + $0xb0] sm:$0xff] %v691
    %756 = vst [vmem:[#allocation2 + $0xb8] sm:$0xff] %v692
    %757 = vst [vmem:[#allocation2 + $0xc0] sm:$0xff] %v693
    %758 = vst [vmem:[#allocation2 + $0xc8] sm:$0xff] %v694
    %759 = vst [vmem:[#allocation2 + $0xd0] sm:$0xff] %v695
    %760 = vst [vmem:[#allocation2 + $0xd8] sm:$0xff] %v696
    %761 = vst [vmem:[#allocation2 + $0xe0] sm:$0xff] %v697
    %762 = vst [vmem:[#allocation2 + $0xe8] sm:$0xff] %v698
    %763 = vst [vmem:[#allocation2 + $0xf0] sm:$0xff] %v699
    %764 = vst [vmem:[#allocation2 + $0xf8] sm:$0xff] %v700
    %765 = vst [vmem:[#allocation2 + $0x100] sm:$0xff] %v701
    %766 = vst [vmem:[#allocation2 + $0x108] sm:$0xff] %v702
    %767 = vst [vmem:[#allocation2 + $0x110] sm:$0xff] %v703
    %768 = vst [vmem:[#allocation2 + $0x118] sm:$0xff] %v704
    %769 = vst [vmem:[#allocation2 + $0x120] sm:$0xff] %v705
    %770 = vst [vmem:[#allocation2 + $0x128] sm:$0xff] %v706
    %771 = vst [vmem:[#allocation2 + $0x130] sm:$0xff] %v707
    %772 = vst [vmem:[#allocation2 + $0x138] sm:$0xff] %v708
    %773 = vst [vmem:[#allocation2 + $0x140] sm:$0xff] %v709
    %774 = vst [vmem:[#allocation2 + $0x148] sm:$0xff] %v710
    %775 = vst [vmem:[#allocation2 + $0x150] sm:$0xff] %v711
    %776 = vst [vmem:[#allocation2 + $0x158] sm:$0xff] %v712
    %777 = vst [vmem:[#allocation2 + $0x160] sm:$0xff] %v713
    %778 = vst [vmem:[#allocation2 + $0x168] sm:$0xff] %v714
    %779 = vst [vmem:[#allocation2 + $0x170] sm:$0xff] %v715
    %780 = vst [vmem:[#allocation2 + $0x178] sm:$0xff] %v716
    %781 = vst [vmem:[#allocation2 + $0x180] sm:$0xff] %v717
    %782 = vst [vmem:[#allocation2 + $0x188] sm:$0xff] %v718
    %783 = vst [vmem:[#allocation2 + $0x190] sm:$0xff] %v719
    %784 = vst [vmem:[#allocation2 + $0x198] sm:$0xff] %v720
    %785 = vst [vmem:[#allocation2 + $0x1a0] sm:$0xff] %v721
    %786 = vst [vmem:[#allocation2 + $0x1a8] sm:$0xff] %v722
    %787 = vst [vmem:[#allocation2 + $0x1b0] sm:$0xff] %v723
    %788 = vst [vmem:[#allocation2 + $0x1b8] sm:$0xff] %v724
    %789 = vst [vmem:[#allocation2 + $0x1c0] sm:$0xff] %v725
    %790 = vst [vmem:[#allocation2 + $0x1c8] sm:$0xff] %v726
    %791 = vst [vmem:[#allocation2 + $0x1d0] sm:$0xff] %v727
    %792 = vst [vmem:[#allocation2 + $0x1d8] sm:$0xff] %v728
    %793 = vst [vmem:[#allocation2 + $0x1e0] sm:$0xff] %v729
    %794 = vst [vmem:[#allocation2 + $0x1e8] sm:$0xff] %v730
    %795 = vst [vmem:[#allocation2 + $0x1f0] sm:$0xff] %v731
    %796 = vst [vmem:[#allocation2 + $0x1f8] sm:$0xff] %v732
    // Predicated region
    $region30: #{tpu_custom_call.1} parent=1 // pred_check
      %p797 = pneg %p55
    $region31: #{tpu_custom_call.1} parent=1 // pred_check_branch
      %799 = sbr.rel (%p797) target = $region33
    $region32: #{tpu_custom_call.1} parent=1 // pred_region
      %v800 = vld [vmem:[#allocation2] sm:$0xff]
      %v801 = vld [vmem:[#allocation2 + $0x8] sm:$0xff]
      %v802 = vld [vmem:[#allocation2 + $0x10] sm:$0xff]
      %v803 = vld [vmem:[#allocation2 + $0x18] sm:$0xff]
      %v804 = vld [vmem:[#allocation2 + $0x20] sm:$0xff]
      %v805 = vld [vmem:[#allocation2 + $0x28] sm:$0xff]
      %v806 = vld [vmem:[#allocation2 + $0x30] sm:$0xff]
      %v807 = vld [vmem:[#allocation2 + $0x38] sm:$0xff]
      %v808 = vld [vmem:[#allocation2 + $0x40] sm:$0xff]
      %v809 = vld [vmem:[#allocation2 + $0x48] sm:$0xff]
      %v810 = vld [vmem:[#allocation2 + $0x50] sm:$0xff]
      %v811 = vld [vmem:[#allocation2 + $0x58] sm:$0xff]
      %v812 = vld [vmem:[#allocation2 + $0x60] sm:$0xff]
      %v813 = vld [vmem:[#allocation2 + $0x68] sm:$0xff]
      %v814 = vld [vmem:[#allocation2 + $0x70] sm:$0xff]
      %v815 = vld [vmem:[#allocation2 + $0x78] sm:$0xff]
      %v816 = vld [vmem:[#allocation2 + $0x80] sm:$0xff]
      %v817 = vld [vmem:[#allocation2 + $0x88] sm:$0xff]
      %v818 = vld [vmem:[#allocation2 + $0x90] sm:$0xff]
      %v819 = vld [vmem:[#allocation2 + $0x98] sm:$0xff]
      %v820 = vld [vmem:[#allocation2 + $0xa0] sm:$0xff]
      %v821 = vld [vmem:[#allocation2 + $0xa8] sm:$0xff]
      %v822 = vld [vmem:[#allocation2 + $0xb0] sm:$0xff]
      %v823 = vld [vmem:[#allocation2 + $0xb8] sm:$0xff]
      %v824 = vld [vmem:[#allocation2 + $0xc0] sm:$0xff]
      %v825 = vld [vmem:[#allocation2 + $0xc8] sm:$0xff]
      %v826 = vld [vmem:[#allocation2 + $0xd0] sm:$0xff]
      %v827 = vld [vmem:[#allocation2 + $0xd8] sm:$0xff]
      %v828 = vld [vmem:[#allocation2 + $0xe0] sm:$0xff]
      %v829 = vld [vmem:[#allocation2 + $0xe8] sm:$0xff]
      %v830 = vld [vmem:[#allocation2 + $0xf0] sm:$0xff]
      %v831 = vld [vmem:[#allocation2 + $0xf8] sm:$0xff]
      %v832 = vld [vmem:[#allocation2 + $0x100] sm:$0xff]
      %v833 = vld [vmem:[#allocation2 + $0x108] sm:$0xff]
      %v834 = vld [vmem:[#allocation2 + $0x110] sm:$0xff]
      %v835 = vld [vmem:[#allocation2 + $0x118] sm:$0xff]
      %v836 = vld [vmem:[#allocation2 + $0x120] sm:$0xff]
      %v837 = vld [vmem:[#allocation2 + $0x128] sm:$0xff]
      %v838 = vld [vmem:[#allocation2 + $0x130] sm:$0xff]
      %v839 = vld [vmem:[#allocation2 + $0x138] sm:$0xff]
      %v840 = vld [vmem:[#allocation2 + $0x140] sm:$0xff]
      %v841 = vld [vmem:[#allocation2 + $0x148] sm:$0xff]
      %v842 = vld [vmem:[#allocation2 + $0x150] sm:$0xff]
      %v843 = vld [vmem:[#allocation2 + $0x158] sm:$0xff]
      %v844 = vld [vmem:[#allocation2 + $0x160] sm:$0xff]
      %v845 = vld [vmem:[#allocation2 + $0x168] sm:$0xff]
      %v846 = vld [vmem:[#allocation2 + $0x170] sm:$0xff]
      %v847 = vld [vmem:[#allocation2 + $0x178] sm:$0xff]
      %v848 = vld [vmem:[#allocation2 + $0x180] sm:$0xff]
      %v849 = vld [vmem:[#allocation2 + $0x188] sm:$0xff]
      %v850 = vld [vmem:[#allocation2 + $0x190] sm:$0xff]
      %v851 = vld [vmem:[#allocation2 + $0x198] sm:$0xff]
      %v852 = vld [vmem:[#allocation2 + $0x1a0] sm:$0xff]
      %v853 = vld [vmem:[#allocation2 + $0x1a8] sm:$0xff]
      %v854 = vld [vmem:[#allocation2 + $0x1b0] sm:$0xff]
      %v855 = vld [vmem:[#allocation2 + $0x1b8] sm:$0xff]
      %v856 = vld [vmem:[#allocation2 + $0x1c0] sm:$0xff]
      %v857 = vld [vmem:[#allocation2 + $0x1c8] sm:$0xff]
      %v858 = vld [vmem:[#allocation2 + $0x1d0] sm:$0xff]
      %v859 = vld [vmem:[#allocation2 + $0x1d8] sm:$0xff]
      %v860 = vld [vmem:[#allocation2 + $0x1e0] sm:$0xff]
      %v861 = vld [vmem:[#allocation2 + $0x1e8] sm:$0xff]
      %v862 = vld [vmem:[#allocation2 + $0x1f0] sm:$0xff]
      %v863 = vld [vmem:[#allocation2 + $0x1f8] sm:$0xff]
      %v864 = vld [vmem:[#allocation8] sm:$0xf]
      %v866 = vlaneseq
      %v867 = vshrl.u32 %v866, 7
      %v868 = vsub.s32 0, %v867
      %v869 = vrot.slane %v864, %v868
      %v870 = vlaneseq
      %v871 = vshrl.u32 %v870, 7
      %v872 = vsub.s32 1, %v871
      %v873 = vrot.slane %v864, %v872
      %v874 = vlaneseq
      %v875 = vshrl.u32 %v874, 7
      %v876 = vsub.s32 2, %v875
      %v877 = vrot.slane %v864, %v876
      %v878 = vlaneseq
      %v879 = vshrl.u32 %v878, 7
      %v880 = vsub.s32 3, %v879
      %v881 = vrot.slane %v864, %v880
      %v886 = vadd.f32 %v800, %v869
      %v887 = vadd.f32 %v801, %v873
      %v888 = vadd.f32 %v802, %v877
      %v889 = vadd.f32 %v803, %v881
      %v890 = vadd.f32 %v804, %v869
      %v891 = vadd.f32 %v805, %v873
      %v892 = vadd.f32 %v806, %v877
      %v893 = vadd.f32 %v807, %v881
      %v894 = vadd.f32 %v808, %v869
      %v895 = vadd.f32 %v809, %v873
      %v896 = vadd.f32 %v810, %v877
      %v897 = vadd.f32 %v811, %v881
      %v898 = vadd.f32 %v812, %v869
      %v899 = vadd.f32 %v813, %v873
      %v900 = vadd.f32 %v814, %v877
      %v901 = vadd.f32 %v815, %v881
      %v902 = vadd.f32 %v816, %v869
      %v903 = vadd.f32 %v817, %v873
      %v904 = vadd.f32 %v818, %v877
      %v905 = vadd.f32 %v819, %v881
      %v906 = vadd.f32 %v820, %v869
      %v907 = vadd.f32 %v821, %v873
      %v908 = vadd.f32 %v822, %v877
      %v909 = vadd.f32 %v823, %v881
      %v910 = vadd.f32 %v824, %v869
      %v911 = vadd.f32 %v825, %v873
      %v912 = vadd.f32 %v826, %v877
      %v913 = vadd.f32 %v827, %v881
      %v914 = vadd.f32 %v828, %v869
      %v915 = vadd.f32 %v829, %v873
      %v916 = vadd.f32 %v830, %v877
      %v917 = vadd.f32 %v831, %v881
      %v918 = vadd.f32 %v832, %v869
      %v919 = vadd.f32 %v833, %v873
      %v920 = vadd.f32 %v834, %v877
      %v921 = vadd.f32 %v835, %v881
      %v922 = vadd.f32 %v836, %v869
      %v923 = vadd.f32 %v837, %v873
      %v924 = vadd.f32 %v838, %v877
      %v925 = vadd.f32 %v839, %v881
      %v926 = vadd.f32 %v840, %v869
      %v927 = vadd.f32 %v841, %v873
      %v928 = vadd.f32 %v842, %v877
      %v929 = vadd.f32 %v843, %v881
      %v930 = vadd.f32 %v844, %v869
      %v931 = vadd.f32 %v845, %v873
      %v932 = vadd.f32 %v846, %v877
      %v933 = vadd.f32 %v847, %v881
      %v934 = vadd.f32 %v848, %v869
      %v935 = vadd.f32 %v849, %v873
      %v936 = vadd.f32 %v850, %v877
      %v937 = vadd.f32 %v851, %v881
      %v938 = vadd.f32 %v852, %v869
      %v939 = vadd.f32 %v853, %v873
      %v940 = vadd.f32 %v854, %v877
      %v941 = vadd.f32 %v855, %v881
      %v942 = vadd.f32 %v856, %v869
      %v943 = vadd.f32 %v857, %v873
      %v944 = vadd.f32 %v858, %v877
      %v945 = vadd.f32 %v859, %v881
      %v946 = vadd.f32 %v860, %v869
      %v947 = vadd.f32 %v861, %v873
      %v948 = vadd.f32 %v862, %v877
      %v949 = vadd.f32 %v863, %v881
      %v950 = vpack.c.bf16 %v890, %v886
      %v951 = vpack.c.bf16 %v891, %v887
      %v952 = vpack.c.bf16 %v892, %v888
      %v953 = vpack.c.bf16 %v893, %v889
      %v954 = vpack.c.bf16 %v898, %v894
      %v955 = vpack.c.bf16 %v899, %v895
      %v956 = vpack.c.bf16 %v900, %v896
      %v957 = vpack.c.bf16 %v901, %v897
      %v958 = vpack.c.bf16 %v906, %v902
      %v959 = vpack.c.bf16 %v907, %v903
      %v960 = vpack.c.bf16 %v908, %v904
      %v961 = vpack.c.bf16 %v909, %v905
      %v962 = vpack.c.bf16 %v914, %v910
      %v963 = vpack.c.bf16 %v915, %v911
      %v964 = vpack.c.bf16 %v916, %v912
      %v965 = vpack.c.bf16 %v917, %v913
      %v966 = vpack.c.bf16 %v922, %v918
      %v967 = vpack.c.bf16 %v923, %v919
      %v968 = vpack.c.bf16 %v924, %v920
      %v969 = vpack.c.bf16 %v925, %v921
      %v970 = vpack.c.bf16 %v930, %v926
      %v971 = vpack.c.bf16 %v931, %v927
      %v972 = vpack.c.bf16 %v932, %v928
      %v973 = vpack.c.bf16 %v933, %v929
      %v974 = vpack.c.bf16 %v938, %v934
      %v975 = vpack.c.bf16 %v939, %v935
      %v976 = vpack.c.bf16 %v940, %v936
      %v977 = vpack.c.bf16 %v941, %v937
      %v978 = vpack.c.bf16 %v946, %v942
      %v979 = vpack.c.bf16 %v947, %v943
      %v980 = vpack.c.bf16 %v948, %v944
      %v981 = vpack.c.bf16 %v949, %v945
      %v1014 = vunpack.c.l.b16 %v950
      %v1015 = vunpack.c.l.b16 %v951
      %v1016 = vunpack.c.l.b16 %v952
      %v1017 = vunpack.c.l.b16 %v953
      %v1018 = vunpack.c.h.b16 %v950
      %v1019 = vunpack.c.h.b16 %v951
      %v1020 = vunpack.c.h.b16 %v952
      %v1021 = vunpack.c.h.b16 %v953
      %v1022 = vunpack.c.l.b16 %v954
      %v1023 = vunpack.c.l.b16 %v955
      %v1024 = vunpack.c.l.b16 %v956
      %v1025 = vunpack.c.l.b16 %v957
      %v1026 = vunpack.c.h.b16 %v954
      %v1027 = vunpack.c.h.b16 %v955
      %v1028 = vunpack.c.h.b16 %v956
      %v1029 = vunpack.c.h.b16 %v957
      %v1030 = vunpack.c.l.b16 %v958
      %v1031 = vunpack.c.l.b16 %v959
      %v1032 = vunpack.c.l.b16 %v960
      %v1033 = vunpack.c.l.b16 %v961
      %v1034 = vunpack.c.h.b16 %v958
      %v1035 = vunpack.c.h.b16 %v959
      %v1036 = vunpack.c.h.b16 %v960
      %v1037 = vunpack.c.h.b16 %v961
      %v1038 = vunpack.c.l.b16 %v962
      %v1039 = vunpack.c.l.b16 %v963
      %v1040 = vunpack.c.l.b16 %v964
      %v1041 = vunpack.c.l.b16 %v965
      %v1042 = vunpack.c.h.b16 %v962
      %v1043 = vunpack.c.h.b16 %v963
      %v1044 = vunpack.c.h.b16 %v964
      %v1045 = vunpack.c.h.b16 %v965
      %v1046 = vunpack.c.l.b16 %v966
      %v1047 = vunpack.c.l.b16 %v967
      %v1048 = vunpack.c.l.b16 %v968
      %v1049 = vunpack.c.l.b16 %v969
      %v1050 = vunpack.c.h.b16 %v966
      %v1051 = vunpack.c.h.b16 %v967
      %v1052 = vunpack.c.h.b16 %v968
      %v1053 = vunpack.c.h.b16 %v969
      %v1054 = vunpack.c.l.b16 %v970
      %v1055 = vunpack.c.l.b16 %v971
      %v1056 = vunpack.c.l.b16 %v972
      %v1057 = vunpack.c.l.b16 %v973
      %v1058 = vunpack.c.h.b16 %v970
      %v1059 = vunpack.c.h.b16 %v971
      %v1060 = vunpack.c.h.b16 %v972
      %v1061 = vunpack.c.h.b16 %v973
      %v1062 = vunpack.c.l.b16 %v974
      %v1063 = vunpack.c.l.b16 %v975
      %v1064 = vunpack.c.l.b16 %v976
      %v1065 = vunpack.c.l.b16 %v977
      %v1066 = vunpack.c.h.b16 %v974
      %v1067 = vunpack.c.h.b16 %v975
      %v1068 = vunpack.c.h.b16 %v976
      %v1069 = vunpack.c.h.b16 %v977
      %v1070 = vunpack.c.l.b16 %v978
      %v1071 = vunpack.c.l.b16 %v979
      %v1072 = vunpack.c.l.b16 %v980
      %v1073 = vunpack.c.l.b16 %v981
      %v1074 = vunpack.c.h.b16 %v978
      %v1075 = vunpack.c.h.b16 %v979
      %v1076 = vunpack.c.h.b16 %v980
      %v1077 = vunpack.c.h.b16 %v981
      %v1078 = vpack.c.b16 %v1015, %v1014
      %v1079 = vpack.c.b16 %v1017, %v1016
      %v1080 = vpack.c.b16 %v1019, %v1018
      %v1081 = vpack.c.b16 %v1021, %v1020
      %v1082 = vpack.c.b16 %v1023, %v1022
      %v1083 = vpack.c.b16 %v1025, %v1024
      %v1084 = vpack.c.b16 %v1027, %v1026
      %v1085 = vpack.c.b16 %v1029, %v1028
      %v1086 = vpack.c.b16 %v1031, %v1030
      %v1087 = vpack.c.b16 %v1033, %v1032
      %v1088 = vpack.c.b16 %v1035, %v1034
      %v1089 = vpack.c.b16 %v1037, %v1036
      %v1090 = vpack.c.b16 %v1039, %v1038
      %v1091 = vpack.c.b16 %v1041, %v1040
      %v1092 = vpack.c.b16 %v1043, %v1042
      %v1093 = vpack.c.b16 %v1045, %v1044
      %v1094 = vpack.c.b16 %v1047, %v1046
      %v1095 = vpack.c.b16 %v1049, %v1048
      %v1096 = vpack.c.b16 %v1051, %v1050
      %v1097 = vpack.c.b16 %v1053, %v1052
      %v1098 = vpack.c.b16 %v1055, %v1054
      %v1099 = vpack.c.b16 %v1057, %v1056
      %v1100 = vpack.c.b16 %v1059, %v1058
      %v1101 = vpack.c.b16 %v1061, %v1060
      %v1102 = vpack.c.b16 %v1063, %v1062
      %v1103 = vpack.c.b16 %v1065, %v1064
      %v1104 = vpack.c.b16 %v1067, %v1066
      %v1105 = vpack.c.b16 %v1069, %v1068
      %v1106 = vpack.c.b16 %v1071, %v1070
      %v1107 = vpack.c.b16 %v1073, %v1072
      %v1108 = vpack.c.b16 %v1075, %v1074
      %v1109 = vpack.c.b16 %v1077, %v1076
      %1142 = vst [vmem:[#allocation9] sm:$0xff] %v1078
      %1143 = vst [vmem:[#allocation9 + $0x8] sm:$0xff] %v1079
      %1144 = vst [vmem:[#allocation9 + $0x10] sm:$0xff] %v1080
      %1145 = vst [vmem:[#allocation9 + $0x18] sm:$0xff] %v1081
      %1146 = vst [vmem:[#allocation9 + $0x20] sm:$0xff] %v1082
      %1147 = vst [vmem:[#allocation9 + $0x28] sm:$0xff] %v1083
      %1148 = vst [vmem:[#allocation9 + $0x30] sm:$0xff] %v1084
      %1149 = vst [vmem:[#allocation9 + $0x38] sm:$0xff] %v1085
      %1150 = vst [vmem:[#allocation9 + $0x40] sm:$0xff] %v1086
      %1151 = vst [vmem:[#allocation9 + $0x48] sm:$0xff] %v1087
      %1152 = vst [vmem:[#allocation9 + $0x50] sm:$0xff] %v1088
      %1153 = vst [vmem:[#allocation9 + $0x58] sm:$0xff] %v1089
      %1154 = vst [vmem:[#allocation9 + $0x60] sm:$0xff] %v1090
      %1155 = vst [vmem:[#allocation9 + $0x68] sm:$0xff] %v1091
      %1156 = vst [vmem:[#allocation9 + $0x70] sm:$0xff] %v1092
      %1157 = vst [vmem:[#allocation9 + $0x78] sm:$0xff] %v1093
      %1158 = vst [vmem:[#allocation9 + $0x80] sm:$0xff] %v1094
      %1159 = vst [vmem:[#allocation9 + $0x88] sm:$0xff] %v1095
      %1160 = vst [vmem:[#allocation9 + $0x90] sm:$0xff] %v1096
      %1161 = vst [vmem:[#allocation9 + $0x98] sm:$0xff] %v1097
      %1162 = vst [vmem:[#allocation9 + $0xa0] sm:$0xff] %v1098
      %1163 = vst [vmem:[#allocation9 + $0xa8] sm:$0xff] %v1099
      %1164 = vst [vmem:[#allocation9 + $0xb0] sm:$0xff] %v1100
      %1165 = vst [vmem:[#allocation9 + $0xb8] sm:$0xff] %v1101
      %1166 = vst [vmem:[#allocation9 + $0xc0] sm:$0xff] %v1102
      %1167 = vst [vmem:[#allocation9 + $0xc8] sm:$0xff] %v1103
      %1168 = vst [vmem:[#allocation9 + $0xd0] sm:$0xff] %v1104
      %1169 = vst [vmem:[#allocation9 + $0xd8] sm:$0xff] %v1105
      %1170 = vst [vmem:[#allocation9 + $0xe0] sm:$0xff] %v1106
      %1171 = vst [vmem:[#allocation9 + $0xe8] sm:$0xff] %v1107
      %1172 = vst [vmem:[#allocation9 + $0xf0] sm:$0xff] %v1108
      %1173 = vst [vmem:[#allocation9 + $0xf8] sm:$0xff] %v1109
    $region33: #{tpu_custom_call.1} parent=1 // pred_fallthru
      _
    // Predicated region
    $region34: #{tpu_custom_call.1} parent=1 // pred_check
      _
    $region35: #{tpu_custom_call.1} parent=1 // pred_check_branch
      %1175 = sbr.rel (0) target = $region37
    $region36: #{tpu_custom_call.1} parent=1 // pred_region
      %s1177 = ssub.s32 4096, 4096
      %1178 = vsyncadd [#allocation5], %s1177
      %s1179 = sshll.u32 [#allocation9], 4
      %s1180 = int_to_ptr.vmem [resolvable:$true] %s1179
      %1185 = dma.vmem_to_hbm [thread:$0]  %s1180, 4096, %s3, [#allocation5], 256, 256, 16
    $region37: #{tpu_custom_call.1} parent=1 // pred_fallthru
      _
    // Predicated region
    $region38: #{tpu_custom_call.1} parent=1 // pred_check
      _
    $region39: #{tpu_custom_call.1} parent=1 // pred_check_branch
      %1187 = sbr.rel (0) target = $region41
    $region40: #{tpu_custom_call.1} parent=1 // pred_region
      %1188 = dma.done [#allocation5], 4096
    $region41: #{tpu_custom_call.1} parent=1 // pred_fallthru
      _
    %1189 = vsyncpa [#allocation4], 1
    %1190 = vsyncpa [#allocation7], 1
    %1191 = vsyncpa [#allocation5], 1

</llo_original>
